<compile_context>
chip_gen: v7x
topology: tpu7x:2x2x1
jax: 0.10.0
libtpu: 0.0.40
codegen_flags: <defaults>
</compile_context>

<pallas_src>
import functools

import jax
import jax.numpy as jnp
from jax.experimental import pallas as pl
from jax.experimental.pallas import tpu as pltpu


def _round_up(x, m):
    return ((x + m - 1) // m) * m


def _pad2(x, rows, cols):
    r, c = x.shape
    return jnp.pad(x, ((0, rows - r), (0, cols - c)))


def _actor_kernel(obs_ref, act_ref,
                  w1_ref, b1_ref, w2_ref, b2_ref, w3_ref, b3_ref,
                  inv_std_ref, logc_ref,
                  mu_ref, logp_ref):
    wdt = w1_ref.dtype

    x = obs_ref[...].astype(wdt)                                     # [tb, obs_dim]
    h1 = jnp.tanh(
        jnp.dot(x, w1_ref[...], preferred_element_type=jnp.float32)
        + b1_ref[...])                                               # [tb, hid_p] f32
    h2 = jnp.tanh(
        jnp.dot(h1.astype(wdt), w2_ref[...],
                preferred_element_type=jnp.float32)
        + b2_ref[...])                                               # [tb, hid_p] f32
    mu = (jnp.dot(h2.astype(wdt), w3_ref[...],
                  preferred_element_type=jnp.float32)
          + b3_ref[...])                                             # [tb, act_dim] f32
    mu_ref[...] = mu.astype(mu_ref.dtype)

    # Normal(mu, std).log_prob(act) summed over the (unpadded) action axis.
    a = act_ref[...].astype(jnp.float32)                             # [tb, act_dim]
    z = (a - mu) * inv_std_ref[...]
    logp_ref[...] = logc_ref[...] - 0.5 * jnp.sum(z * z, axis=-1,
                                                  keepdims=True)     # [tb, 1]


def prepack_params(params, use_bf16=False):
    """Pad/cast the tiny VMEM-resident operands once, outside the call path."""
    obs_dim, hid = params["w1"].shape
    act_dim = params["w3"].shape[1]
    hid_p = _round_up(hid, 128)
    wdt = jnp.bfloat16 if use_bf16 else jnp.float32

    log_std = params["log_std"].astype(jnp.float32)                  # [1, act_dim]
    packed = dict(
        w1=_pad2(params["w1"].astype(wdt), obs_dim, hid_p),
        b1=_pad2(params["b1"].astype(jnp.float32), 1, hid_p),
        w2=_pad2(params["w2"].astype(wdt), hid_p, hid_p),
        b2=_pad2(params["b2"].astype(jnp.float32), 1, hid_p),
        w3=_pad2(params["w3"].astype(wdt), hid_p, act_dim),
        b3=params["b3"].astype(jnp.float32),                         # [1, act_dim]
        inv_std=jnp.exp(-log_std),                                   # [1, act_dim]
        logc_sum=jnp.sum(-log_std - 0.5 * jnp.log(2.0 * jnp.pi)
                         ).reshape(1, 1),                            # [1, 1]
        log_std=log_std,
    )
    return packed


def _pick_batch_tile(B, tb):
    """Single full-batch tile for small B; >=2 parallel steps for B>=256 (v7x)."""
    if B < 256:
        return B, 1
    tb_eff = min(tb, max(128, _round_up(pl.cdiv(B, 2), 128)))
    return tb_eff, pl.cdiv(B, tb_eff)


@functools.partial(jax.jit, static_argnames=("tb",))
def continuous_mlp_actor_forward(obs, act, packed, tb=1024):
    """Returns (mu, std, logp_a) == (Normal(mu, std), logp_a) of the torch module."""
    B, obs_dim = obs.shape
    act_dim = act.shape[-1]
    hid_p = packed["w1"].shape[1]

    tb_eff, nsteps = _pick_batch_tile(B, tb)
    grid = (nsteps,)

    mu, logp_col = pl.pallas_call(
        _actor_kernel,
        out_shape=(
            jax.ShapeDtypeStruct((B, act_dim), jnp.float32),
            jax.ShapeDtypeStruct((B, 1), jnp.float32),
        ),
        grid_spec=pltpu.PrefetchScalarGridSpec(
            num_scalar_prefetch=0,
            grid=grid,
            in_specs=[
                pl.BlockSpec((tb_eff, obs_dim), lambda i: (i, 0)),   # obs tile (unpadded)
                pl.BlockSpec((tb_eff, act_dim), lambda i: (i, 0)),   # act tile (unpadded)
                pl.BlockSpec((obs_dim, hid_p), lambda i: (0, 0)),    # W1 (resident)
                pl.BlockSpec((1, hid_p), lambda i: (0, 0)),          # b1
                pl.BlockSpec((hid_p, hid_p), lambda i: (0, 0)),      # W2
                pl.BlockSpec((1, hid_p), lambda i: (0, 0)),          # b2
                pl.BlockSpec((hid_p, act_dim), lambda i: (0, 0)),    # W3
                pl.BlockSpec((1, act_dim), lambda i: (0, 0)),        # b3
                pl.BlockSpec((1, act_dim), lambda i: (0, 0)),        # exp(-log_std)
                pl.BlockSpec((1, 1), lambda i: (0, 0)),              # sum(-log_std - 0.5*log(2pi))
            ],
            out_specs=[
                pl.BlockSpec((tb_eff, act_dim), lambda i: (i, 0)),   # mu (unpadded)
                pl.BlockSpec((tb_eff, 1), lambda i: (i, 0)),         # logp_a column
            ],
        ),
        compiler_params=pltpu.CompilerParams(
            dimension_semantics=("parallel",)),
    )(obs, act,
      packed["w1"], packed["b1"], packed["w2"], packed["b2"],
      packed["w3"], packed["b3"], packed["inv_std"], packed["logc_sum"])

    logp = logp_col[:, 0]
    std = jnp.exp(packed["log_std"][0])                              # [act_dim]
    return mu, std, logp


def init_params(key, obs_dim, hid_dim, act_dim):
    """Deterministic synthetic init (shapes match the module's nn.Linear layers)."""
    k1, k2, k3 = jax.random.split(key, 3)

    def linear(k, fan_in, fan_out):
        bound = 1.0 / jnp.sqrt(fan_in)
        kw, kb = jax.random.split(k)
        w = jax.random.uniform(kw, (fan_in, fan_out), jnp.float32, -bound, bound)
        b = jax.random.uniform(kb, (1, fan_out), jnp.float32, -bound, bound)
        return w, b

    w1, b1 = linear(k1, obs_dim, hid_dim)
    w2, b2 = linear(k2, hid_dim, hid_dim)
    w3, b3 = linear(k3, hid_dim, act_dim)
    log_std = jnp.full((1, act_dim), -0.5, dtype=jnp.float32)        # = -0.5*np.ones(act_dim)
    return dict(w1=w1, b1=b1, w2=w2, b2=b2, w3=w3, b3=b3, log_std=log_std)


def _reference_forward(obs, act, params):
    h1 = jnp.tanh(obs @ params["w1"] + params["b1"])
    h2 = jnp.tanh(h1 @ params["w2"] + params["b2"])
    mu = h2 @ params["w3"] + params["b3"]
    log_std = params["log_std"]
    std = jnp.exp(log_std)
    z = (act - mu) / std
    logp = jnp.sum(-0.5 * z * z - log_std - 0.5 * jnp.log(2.0 * jnp.pi), axis=-1)
    return mu, logp


if __name__ == "__main__":
    # B=256 -> 2-step "parallel" batch grid (uses both v7x TensorCores);
    # obs/act/mu streamed with their true (unpadded) feature widths.
    B, OBS_DIM, HID_DIM, ACT_DIM = 256, 16, 32, 8

    key = jax.random.PRNGKey(0)
    k_params, k_obs, k_act = jax.random.split(key, 3)

    params = init_params(k_params, OBS_DIM, HID_DIM, ACT_DIM)
    obs = jax.random.normal(k_obs, (B, OBS_DIM), jnp.float32)
    act = jax.random.normal(k_act, (B, ACT_DIM), jnp.float32)

    packed = prepack_params(params, use_bf16=False)   # weights padded/cast once
    mu, std, logp_a = continuous_mlp_actor_forward(obs, act, packed)
    jax.block_until_ready((mu, std, logp_a))

    mu_ref, logp_ref = _reference_forward(obs, act, params)
    assert mu.shape == (B, ACT_DIM) and logp_a.shape == (B,) and std.shape == (ACT_DIM,)
    assert jnp.allclose(mu, mu_ref, atol=1e-4, rtol=1e-4), float(jnp.max(jnp.abs(mu - mu_ref)))
    assert jnp.allclose(logp_a, logp_ref, atol=1e-4, rtol=1e-4), float(jnp.max(jnp.abs(logp_a - logp_ref)))
    assert jnp.allclose(std, jnp.exp(params["log_std"][0]))

    print("KERNEL_OK")
</pallas_src>

<mosaic_0001>
module attributes {stable_mosaic.version = 11 : i64} {
  func.func @_actor_kernel(%arg0: i32, %arg1: memref<128x16xf32, #tpu.memory_space<vmem>>, %arg2: memref<128x8xf32, #tpu.memory_space<vmem>>, %arg3: memref<16x128xf32, #tpu.memory_space<vmem>>, %arg4: memref<1x128xf32, #tpu.memory_space<vmem>>, %arg5: memref<128x128xf32, #tpu.memory_space<vmem>>, %arg6: memref<1x128xf32, #tpu.memory_space<vmem>>, %arg7: memref<128x8xf32, #tpu.memory_space<vmem>>, %arg8: memref<1x8xf32, #tpu.memory_space<vmem>>, %arg9: memref<1x8xf32, #tpu.memory_space<vmem>>, %arg10: memref<1x1xf32, #tpu.memory_space<vmem>>, %arg11: memref<128x8xf32, #tpu.memory_space<vmem>>, %arg12: memref<128x1xf32, #tpu.memory_space<vmem>>) attributes {dimension_semantics = [#tpu.dimension_semantics<parallel>], iteration_bounds = array<i64: 2>, scalar_prefetch = 0 : i64, scratch_operands = 0 : i64, tpu.core_type = #tpu.core_type<tc>, window_params = [{transform_indices = @transform_0, window_bounds = array<i64: 128, 16>}, {transform_indices = @transform_1, window_bounds = array<i64: 128, 8>}, {pipeline_mode = #tpu.pipeline_mode<synchronous>, transform_indices = @transform_2, window_bounds = array<i64: 16, 128>}, {pipeline_mode = #tpu.pipeline_mode<synchronous>, transform_indices = @transform_3, window_bounds = array<i64: 1, 128>}, {pipeline_mode = #tpu.pipeline_mode<synchronous>, transform_indices = @transform_4, window_bounds = array<i64: 128, 128>}, {pipeline_mode = #tpu.pipeline_mode<synchronous>, transform_indices = @transform_5, window_bounds = array<i64: 1, 128>}, {pipeline_mode = #tpu.pipeline_mode<synchronous>, transform_indices = @transform_6, window_bounds = array<i64: 128, 8>}, {pipeline_mode = #tpu.pipeline_mode<synchronous>, transform_indices = @transform_7, window_bounds = array<i64: 1, 8>}, {pipeline_mode = #tpu.pipeline_mode<synchronous>, transform_indices = @transform_8, window_bounds = array<i64: 1, 8>}, {pipeline_mode = #tpu.pipeline_mode<synchronous>, transform_indices = @transform_9, window_bounds = array<i64: 1, 1>}, {transform_indices = @transform_10, window_bounds = array<i64: 128, 8>}, {transform_indices = @transform_11, window_bounds = array<i64: 128, 1>}]} {
    %c0 = arith.constant 0 : index
    %c0_0 = arith.constant 0 : index
    %0 = vector.load %arg1[%c0, %c0_0] : memref<128x16xf32, #tpu.memory_space<vmem>>, vector<128x16xf32>
    %c0_1 = arith.constant 0 : index
    %c0_2 = arith.constant 0 : index
    %1 = vector.load %arg3[%c0_1, %c0_2] : memref<16x128xf32, #tpu.memory_space<vmem>>, vector<16x128xf32>
    %cst = arith.constant dense<0.000000e+00> : vector<128x128xf32>
    %2 = tpu.matmul %0, %1, %cst {dimension_numbers = #tpu.dot_dimension_numbers<[1], [0], [0], [1], [0, 0, 1, 1], [], []>} : vector<128x16xf32>, vector<16x128xf32>, vector<128x128xf32> -> vector<128x128xf32>
    %c0_3 = arith.constant 0 : index
    %c0_4 = arith.constant 0 : index
    %3 = vector.load %arg4[%c0_3, %c0_4] : memref<1x128xf32, #tpu.memory_space<vmem>>, vector<1x128xf32>
    %4 = vector.broadcast %3 : vector<1x128xf32> to vector<128x128xf32>
    %5 = arith.addf %2, %4 : vector<128x128xf32>
    %6 = math.tanh %5 : vector<128x128xf32>
    %c0_5 = arith.constant 0 : index
    %c0_6 = arith.constant 0 : index
    %7 = vector.load %arg5[%c0_5, %c0_6] : memref<128x128xf32, #tpu.memory_space<vmem>>, vector<128x128xf32>
    %cst_7 = arith.constant dense<0.000000e+00> : vector<128x128xf32>
    %8 = tpu.matmul %6, %7, %cst_7 {dimension_numbers = #tpu.dot_dimension_numbers<[1], [0], [0], [1], [0, 0, 1, 1], [], []>} : vector<128x128xf32>, vector<128x128xf32>, vector<128x128xf32> -> vector<128x128xf32>
    %c0_8 = arith.constant 0 : index
    %c0_9 = arith.constant 0 : index
    %9 = vector.load %arg6[%c0_8, %c0_9] : memref<1x128xf32, #tpu.memory_space<vmem>>, vector<1x128xf32>
    %10 = vector.broadcast %9 : vector<1x128xf32> to vector<128x128xf32>
    %11 = arith.addf %8, %10 : vector<128x128xf32>
    %12 = math.tanh %11 : vector<128x128xf32>
    %c0_10 = arith.constant 0 : index
    %c0_11 = arith.constant 0 : index
    %13 = vector.load %arg7[%c0_10, %c0_11] : memref<128x8xf32, #tpu.memory_space<vmem>>, vector<128x8xf32>
    %cst_12 = arith.constant dense<0.000000e+00> : vector<128x8xf32>
    %14 = tpu.matmul %12, %13, %cst_12 {dimension_numbers = #tpu.dot_dimension_numbers<[1], [0], [0], [1], [0, 0, 1, 1], [], []>} : vector<128x128xf32>, vector<128x8xf32>, vector<128x8xf32> -> vector<128x8xf32>
    %c0_13 = arith.constant 0 : index
    %c0_14 = arith.constant 0 : index
    %15 = vector.load %arg8[%c0_13, %c0_14] : memref<1x8xf32, #tpu.memory_space<vmem>>, vector<1x8xf32>
    %16 = vector.broadcast %15 : vector<1x8xf32> to vector<128x8xf32>
    %17 = arith.addf %14, %16 : vector<128x8xf32>
    %c0_15 = arith.constant 0 : index
    %c0_16 = arith.constant 0 : index
    %18 = vector.load %arg11[%c0_15, %c0_16] : memref<128x8xf32, #tpu.memory_space<vmem>>, vector<128x8xf32>
    tpu.vector_store %arg11[%c0_15, %c0_16], %17 {strides = array<i32>} : memref<128x8xf32, #tpu.memory_space<vmem>>, vector<128x8xf32>,
    %c0_17 = arith.constant 0 : index
    %c0_18 = arith.constant 0 : index
    %19 = vector.load %arg2[%c0_17, %c0_18] : memref<128x8xf32, #tpu.memory_space<vmem>>, vector<128x8xf32>
    %20 = arith.subf %19, %17 : vector<128x8xf32>
    %c0_19 = arith.constant 0 : index
    %c0_20 = arith.constant 0 : index
    %21 = vector.load %arg9[%c0_19, %c0_20] : memref<1x8xf32, #tpu.memory_space<vmem>>, vector<1x8xf32>
    %22 = vector.broadcast %21 : vector<1x8xf32> to vector<128x8xf32>
    %23 = arith.mulf %20, %22 : vector<128x8xf32>
    %c0_21 = arith.constant 0 : index
    %c0_22 = arith.constant 0 : index
    %24 = vector.load %arg10[%c0_21, %c0_22] : memref<1x1xf32, #tpu.memory_space<vmem>>, vector<1x1xf32>
    %25 = arith.mulf %23, %23 : vector<128x8xf32>
    %cst_23 = arith.constant dense<0.000000e+00> : vector<128xf32>
    %26 = vector.multi_reduction <add>, %25, %cst_23 [1] : vector<128x8xf32> to vector<128xf32>
    %27 = vector.shape_cast %26 : vector<128xf32> to vector<128x1xf32>
    %cst_24 = arith.constant 5.000000e-01 : f32
    %28 = vector.broadcast %cst_24 : f32 to vector<128x1xf32>
    %29 = arith.mulf %28, %27 : vector<128x1xf32>
    %30 = vector.broadcast %24 : vector<1x1xf32> to vector<128x1xf32>
    %31 = arith.subf %30, %29 : vector<128x1xf32>
    %c0_25 = arith.constant 0 : index
    %c0_26 = arith.constant 0 : index
    %32 = vector.load %arg12[%c0_25, %c0_26] : memref<128x1xf32, #tpu.memory_space<vmem>>, vector<128x1xf32>
    tpu.vector_store %arg12[%c0_25, %c0_26], %31 {strides = array<i32>} : memref<128x1xf32, #tpu.memory_space<vmem>>, vector<128x1xf32>,
    return
  }
  func.func @transform_0(%arg0: i32) -> (i32, i32) {
    %c0_i32 = arith.constant 0 : i32
    %c0_i32_0 = arith.constant 0 : i32
    return %arg0, %c0_i32 : i32, i32
  }
  func.func @transform_1(%arg0: i32) -> (i32, i32) {
    %c0_i32 = arith.constant 0 : i32
    %c0_i32_0 = arith.constant 0 : i32
    return %arg0, %c0_i32 : i32, i32
  }
  func.func @transform_2(%arg0: i32) -> (i32, i32) {
    %c0_i32 = arith.constant 0 : i32
    %c0_i32_0 = arith.constant 0 : i32
    %c0_i32_1 = arith.constant 0 : i32
    return %c0_i32, %c0_i32_0 : i32, i32
  }
  func.func @transform_3(%arg0: i32) -> (i32, i32) {
    %c0_i32 = arith.constant 0 : i32
    %c0_i32_0 = arith.constant 0 : i32
    %c0_i32_1 = arith.constant 0 : i32
    return %c0_i32, %c0_i32_0 : i32, i32
  }
  func.func @transform_4(%arg0: i32) -> (i32, i32) {
    %c0_i32 = arith.constant 0 : i32
    %c0_i32_0 = arith.constant 0 : i32
    %c0_i32_1 = arith.constant 0 : i32
    return %c0_i32, %c0_i32_0 : i32, i32
  }
  func.func @transform_5(%arg0: i32) -> (i32, i32) {
    %c0_i32 = arith.constant 0 : i32
    %c0_i32_0 = arith.constant 0 : i32
    %c0_i32_1 = arith.constant 0 : i32
    return %c0_i32, %c0_i32_0 : i32, i32
  }
  func.func @transform_6(%arg0: i32) -> (i32, i32) {
    %c0_i32 = arith.constant 0 : i32
    %c0_i32_0 = arith.constant 0 : i32
    %c0_i32_1 = arith.constant 0 : i32
    return %c0_i32, %c0_i32_0 : i32, i32
  }
  func.func @transform_7(%arg0: i32) -> (i32, i32) {
    %c0_i32 = arith.constant 0 : i32
    %c0_i32_0 = arith.constant 0 : i32
    %c0_i32_1 = arith.constant 0 : i32
    return %c0_i32, %c0_i32_0 : i32, i32
  }
  func.func @transform_8(%arg0: i32) -> (i32, i32) {
    %c0_i32 = arith.constant 0 : i32
    %c0_i32_0 = arith.constant 0 : i32
    %c0_i32_1 = arith.constant 0 : i32
    return %c0_i32, %c0_i32_0 : i32, i32
  }
  func.func @transform_9(%arg0: i32) -> (i32, i32) {
    %c0_i32 = arith.constant 0 : i32
    %c0_i32_0 = arith.constant 0 : i32
    %c0_i32_1 = arith.constant 0 : i32
    return %c0_i32, %c0_i32_0 : i32, i32
  }
  func.func @transform_10(%arg0: i32) -> (i32, i32) {
    %c0_i32 = arith.constant 0 : i32
    %c0_i32_0 = arith.constant 0 : i32
    return %arg0, %c0_i32 : i32, i32
  }
  func.func @transform_11(%arg0: i32) -> (i32, i32) {
    %c0_i32 = arith.constant 0 : i32
    %c0_i32_0 = arith.constant 0 : i32
    return %arg0, %c0_i32 : i32, i32
  }
}

</mosaic_0001>

<llo_original>
// kernel: continuous_mlp_actor_forward.1
$region0: #{continuous_mlp_actor_forward.1}
  #allocation0 [shape = 'u32[]', space=smem, size = 0x4, offset = 0x4, fixed_abs, tag = 'smem constant byte address 0x4 - core index']
  #allocation1 [shape = 'u32[144,128]{1,0:T(1,128)}', space=vmem, size = 0x12000, scoped, tag = 'internal scratch']
  #allocation2 [shape = 'f32[1,1]{1,0:T(1,128)S(1)}', space=vmem, size = 0x200, scoped, tag = 'scoped memory for continuous_mlp_actor_forward.1']
  %s0 = inlined_call_operand.vmem [shape: f32[256,16], index: 0, kind: input, shape index: {}]
  %s1 = inlined_call_operand.vmem [shape: f32[256,8], index: 1, kind: input, shape index: {}]
  %s2 = inlined_call_operand.vmem [shape: f32[16,128], index: 2, kind: input, shape index: {}]
  %s3 = inlined_call_operand.vmem [shape: f32[1,128], index: 3, kind: input, shape index: {}]
  %s4 = inlined_call_operand.vmem [shape: f32[128,128], index: 4, kind: input, shape index: {}]
  %s5 = inlined_call_operand.vmem [shape: f32[1,128], index: 5, kind: input, shape index: {}]
  %s6 = inlined_call_operand.vmem [shape: f32[128,8], index: 6, kind: input, shape index: {}]
  %s7 = inlined_call_operand.vmem [shape: f32[1,8], index: 7, kind: input, shape index: {}]
  %s8 = inlined_call_operand.vmem [shape: f32[1,8], index: 8, kind: input, shape index: {}]
  %s9 = inlined_call_operand.<no memory space> [shape: f32[1,1], index: 9, kind: input, shape index: {}]
  %s10 = inlined_call_operand.vmem [shape: f32[256,8], index: 10, kind: output, shape index: {0}]
  %s11 = inlined_call_operand.vmem [shape: f32[256,1], index: 11, kind: output, shape index: {1}]
  %12 = xla_tuple %s10, %s11
  %s13 = sld [smem:[#allocation0]]
  $region81: #{continuous_mlp_actor_forward.1} parent=0
    _
  %s15 = ssub.s32 1, %s13
  %s16 = scalar_select 0, %s15, %s13
  %v17 = vstv %s9
  %18 = vst [vmem:[#allocation2] sm:$0x1] %v17
  loop: start=0, step=1, limit=4
  $region2: #{continuous_mlp_actor_forward.1} parent=0 // loop_pre_header
    _
  $region3: #{continuous_mlp_actor_forward.1} parent=0 // loop_header
    %s20 = sphi 0, %s24
    %p21 = scmp.ge.s32.totalorder %s20, 4
    %s30 = sphi 0, %s32
    %s33 = sphi 0, %s30
    %s34 = sphi 0, %s33
    %s50 = sphi 0, %s34
    %s56 = sphi 0, %s58
    %s59 = sphi 0, %s56
    %s60 = sphi 0, %s59
    %s76 = sphi 0, %s60
    %s80 = sphi 0, %s80
    %s82 = sphi 0, %s80
    %s83 = sphi 0, %s82
    %s97 = sphi 0, %s83
    %s101 = sphi 0, %s101
    %s103 = sphi 0, %s101
    %s104 = sphi 0, %s103
    %s118 = sphi 0, %s104
    %s122 = sphi 0, %s122
    %s124 = sphi 0, %s122
    %s125 = sphi 0, %s124
    %s139 = sphi 0, %s125
    %s143 = sphi 0, %s143
    %s145 = sphi 0, %s143
    %s146 = sphi 0, %s145
    %s160 = sphi 0, %s146
    %s164 = sphi 0, %s164
    %s166 = sphi 0, %s164
    %s167 = sphi 0, %s166
    %s181 = sphi 0, %s167
    %s185 = sphi 0, %s185
    %s187 = sphi 0, %s185
    %s188 = sphi 0, %s187
    %s202 = sphi 0, %s188
    %s206 = sphi 0, %s206
    %s208 = sphi 0, %s206
    %s209 = sphi 0, %s208
    %s223 = sphi 0, %s209
    %s227 = sphi 0, %s227
    %s229 = sphi 0, %s227
    %s230 = sphi 0, %s229
    %s244 = sphi 0, %s230
    %s250 = sphi 0, %s252
    %s253 = sphi 0, %s250
    %s254 = sphi 0, %s253
    %s270 = sphi 0, %s254
    %s276 = sphi 0, %s278
    %s279 = sphi 0, %s276
    %s280 = sphi 0, %s279
    %s296 = sphi 0, %s280
  $region4: #{continuous_mlp_actor_forward.1} parent=0 // loop_header_branch
    %23 = sbr.rel (%p21) target = $region8
  $region5: #{continuous_mlp_actor_forward.1} parent=0 // loop_body
    %s25 = ssub.s32 %s20, 1
    %s26 = ssub.s32 %s20, 2
    %s27 = sadd.s32 %s20, 1
    %s28 = ssub.s32 %s20, %s27
    %p29 = scmp.eq.s32.totalorder %s28, 0
    %s31 = sadd.s32 %s30, 1
    %s32 = scalar_select %p29, %s30, %s31
    %p35 = pneg %p29
    %p36 = scmp.eq.s32.totalorder %s20, 1
    %p37 = por %p35, %p36
    %p38 = scmp.ne.s32.totalorder %s30, %s33
    %p39 = scmp.eq.s32.totalorder %s20, 0
    %p40 = por %p38, %p39
    %p41 = scmp.ne.s32.totalorder %s30, %s33
    %p42 = scmp.eq.s32.totalorder %s25, 1
    %p43 = por %p41, %p42
    %p44 = scmp.ne.s32.totalorder %s33, %s34
    %p45 = scmp.eq.s32.totalorder %s25, 0
    %p46 = por %p44, %p45
    %p47 = scmp.ne.s32.totalorder %s33, %s34
    %p48 = scmp.eq.s32.totalorder %s26, 1
    %p49 = por %p47, %p48
    %p51 = scmp.ne.s32.totalorder %s34, %s50
    %p52 = scmp.eq.s32.totalorder %s26, 0
    %p53 = por %p51, %p52
    %s54 = ssub.s32 %s20, %s27
    %p55 = scmp.eq.s32.totalorder %s54, 0
    %s57 = sadd.s32 %s56, 1
    %s58 = scalar_select %p55, %s56, %s57
    %p61 = pneg %p55
    %p62 = scmp.eq.s32.totalorder %s20, 1
    %p63 = por %p61, %p62
    %p64 = scmp.ne.s32.totalorder %s56, %s59
    %p65 = scmp.eq.s32.totalorder %s20, 0
    %p66 = por %p64, %p65
    %p67 = scmp.ne.s32.totalorder %s56, %s59
    %p68 = scmp.eq.s32.totalorder %s25, 1
    %p69 = por %p67, %p68
    %p70 = scmp.ne.s32.totalorder %s59, %s60
    %p71 = scmp.eq.s32.totalorder %s25, 0
    %p72 = por %p70, %p71
    %p73 = scmp.ne.s32.totalorder %s59, %s60
    %p74 = scmp.eq.s32.totalorder %s26, 1
    %p75 = por %p73, %p74
    %p77 = scmp.ne.s32.totalorder %s60, %s76
    %p78 = scmp.eq.s32.totalorder %s26, 0
    %p79 = por %p77, %p78
    %s81 = sadd.s32 %s80, 1
    %p84 = scmp.eq.s32.totalorder %s20, 1
    %p85 = scmp.ne.s32.totalorder %s80, %s82
    %p86 = scmp.eq.s32.totalorder %s20, 0
    %p87 = por %p85, %p86
    %p88 = scmp.ne.s32.totalorder %s80, %s82
    %p89 = scmp.eq.s32.totalorder %s25, 1
    %p90 = por %p88, %p89
    %p91 = scmp.ne.s32.totalorder %s82, %s83
    %p92 = scmp.eq.s32.totalorder %s25, 0
    %p93 = por %p91, %p92
    %p94 = scmp.ne.s32.totalorder %s82, %s83
    %p95 = scmp.eq.s32.totalorder %s26, 1
    %p96 = por %p94, %p95
    %p98 = scmp.ne.s32.totalorder %s83, %s97
    %p99 = scmp.eq.s32.totalorder %s26, 0
    %p100 = por %p98, %p99
    %s102 = sadd.s32 %s101, 1
    %p105 = scmp.eq.s32.totalorder %s20, 1
    %p106 = scmp.ne.s32.totalorder %s101, %s103
    %p107 = scmp.eq.s32.totalorder %s20, 0
    %p108 = por %p106, %p107
    %p109 = scmp.ne.s32.totalorder %s101, %s103
    %p110 = scmp.eq.s32.totalorder %s25, 1
    %p111 = por %p109, %p110
    %p112 = scmp.ne.s32.totalorder %s103, %s104
    %p113 = scmp.eq.s32.totalorder %s25, 0
    %p114 = por %p112, %p113
    %p115 = scmp.ne.s32.totalorder %s103, %s104
    %p116 = scmp.eq.s32.totalorder %s26, 1
    %p117 = por %p115, %p116
    %p119 = scmp.ne.s32.totalorder %s104, %s118
    %p120 = scmp.eq.s32.totalorder %s26, 0
    %p121 = por %p119, %p120
    %s123 = sadd.s32 %s122, 1
    %p126 = scmp.eq.s32.totalorder %s20, 1
    %p127 = scmp.ne.s32.totalorder %s122, %s124
    %p128 = scmp.eq.s32.totalorder %s20, 0
    %p129 = por %p127, %p128
    %p130 = scmp.ne.s32.totalorder %s122, %s124
    %p131 = scmp.eq.s32.totalorder %s25, 1
    %p132 = por %p130, %p131
    %p133 = scmp.ne.s32.totalorder %s124, %s125
    %p134 = scmp.eq.s32.totalorder %s25, 0
    %p135 = por %p133, %p134
    %p136 = scmp.ne.s32.totalorder %s124, %s125
    %p137 = scmp.eq.s32.totalorder %s26, 1
    %p138 = por %p136, %p137
    %p140 = scmp.ne.s32.totalorder %s125, %s139
    %p141 = scmp.eq.s32.totalorder %s26, 0
    %p142 = por %p140, %p141
    %s144 = sadd.s32 %s143, 1
    %p147 = scmp.eq.s32.totalorder %s20, 1
    %p148 = scmp.ne.s32.totalorder %s143, %s145
    %p149 = scmp.eq.s32.totalorder %s20, 0
    %p150 = por %p148, %p149
    %p151 = scmp.ne.s32.totalorder %s143, %s145
    %p152 = scmp.eq.s32.totalorder %s25, 1
    %p153 = por %p151, %p152
    %p154 = scmp.ne.s32.totalorder %s145, %s146
    %p155 = scmp.eq.s32.totalorder %s25, 0
    %p156 = por %p154, %p155
    %p157 = scmp.ne.s32.totalorder %s145, %s146
    %p158 = scmp.eq.s32.totalorder %s26, 1
    %p159 = por %p157, %p158
    %p161 = scmp.ne.s32.totalorder %s146, %s160
    %p162 = scmp.eq.s32.totalorder %s26, 0
    %p163 = por %p161, %p162
    %s165 = sadd.s32 %s164, 1
    %p168 = scmp.eq.s32.totalorder %s20, 1
    %p169 = scmp.ne.s32.totalorder %s164, %s166
    %p170 = scmp.eq.s32.totalorder %s20, 0
    %p171 = por %p169, %p170
    %p172 = scmp.ne.s32.totalorder %s164, %s166
    %p173 = scmp.eq.s32.totalorder %s25, 1
    %p174 = por %p172, %p173
    %p175 = scmp.ne.s32.totalorder %s166, %s167
    %p176 = scmp.eq.s32.totalorder %s25, 0
    %p177 = por %p175, %p176
    %p178 = scmp.ne.s32.totalorder %s166, %s167
    %p179 = scmp.eq.s32.totalorder %s26, 1
    %p180 = por %p178, %p179
    %p182 = scmp.ne.s32.totalorder %s167, %s181
    %p183 = scmp.eq.s32.totalorder %s26, 0
    %p184 = por %p182, %p183
    %s186 = sadd.s32 %s185, 1
    %p189 = scmp.eq.s32.totalorder %s20, 1
    %p190 = scmp.ne.s32.totalorder %s185, %s187
    %p191 = scmp.eq.s32.totalorder %s20, 0
    %p192 = por %p190, %p191
    %p193 = scmp.ne.s32.totalorder %s185, %s187
    %p194 = scmp.eq.s32.totalorder %s25, 1
    %p195 = por %p193, %p194
    %p196 = scmp.ne.s32.totalorder %s187, %s188
    %p197 = scmp.eq.s32.totalorder %s25, 0
    %p198 = por %p196, %p197
    %p199 = scmp.ne.s32.totalorder %s187, %s188
    %p200 = scmp.eq.s32.totalorder %s26, 1
    %p201 = por %p199, %p200
    %p203 = scmp.ne.s32.totalorder %s188, %s202
    %p204 = scmp.eq.s32.totalorder %s26, 0
    %p205 = por %p203, %p204
    %s207 = sadd.s32 %s206, 1
    %p210 = scmp.eq.s32.totalorder %s20, 1
    %p211 = scmp.ne.s32.totalorder %s206, %s208
    %p212 = scmp.eq.s32.totalorder %s20, 0
    %p213 = por %p211, %p212
    %p214 = scmp.ne.s32.totalorder %s206, %s208
    %p215 = scmp.eq.s32.totalorder %s25, 1
    %p216 = por %p214, %p215
    %p217 = scmp.ne.s32.totalorder %s208, %s209
    %p218 = scmp.eq.s32.totalorder %s25, 0
    %p219 = por %p217, %p218
    %p220 = scmp.ne.s32.totalorder %s208, %s209
    %p221 = scmp.eq.s32.totalorder %s26, 1
    %p222 = por %p220, %p221
    %p224 = scmp.ne.s32.totalorder %s209, %s223
    %p225 = scmp.eq.s32.totalorder %s26, 0
    %p226 = por %p224, %p225
    %s228 = sadd.s32 %s227, 1
    %p231 = scmp.eq.s32.totalorder %s20, 1
    %p232 = scmp.ne.s32.totalorder %s227, %s229
    %p233 = scmp.eq.s32.totalorder %s20, 0
    %p234 = por %p232, %p233
    %p235 = scmp.ne.s32.totalorder %s227, %s229
    %p236 = scmp.eq.s32.totalorder %s25, 1
    %p237 = por %p235, %p236
    %p238 = scmp.ne.s32.totalorder %s229, %s230
    %p239 = scmp.eq.s32.totalorder %s25, 0
    %p240 = por %p238, %p239
    %p241 = scmp.ne.s32.totalorder %s229, %s230
    %p242 = scmp.eq.s32.totalorder %s26, 1
    %p243 = por %p241, %p242
    %p245 = scmp.ne.s32.totalorder %s230, %s244
    %p246 = scmp.eq.s32.totalorder %s26, 0
    %p247 = por %p245, %p246
    %s248 = ssub.s32 %s20, %s27
    %p249 = scmp.eq.s32.totalorder %s248, 0
    %s251 = sadd.s32 %s250, 1
    %s252 = scalar_select %p249, %s250, %s251
    %p255 = pneg %p249
    %p256 = scmp.eq.s32.totalorder %s20, 1
    %p257 = por %p255, %p256
    %p258 = scmp.ne.s32.totalorder %s250, %s253
    %p259 = scmp.eq.s32.totalorder %s20, 0
    %p260 = por %p258, %p259
    %p261 = scmp.ne.s32.totalorder %s250, %s253
    %p262 = scmp.eq.s32.totalorder %s25, 1
    %p263 = por %p261, %p262
    %p264 = scmp.ne.s32.totalorder %s253, %s254
    %p265 = scmp.eq.s32.totalorder %s25, 0
    %p266 = por %p264, %p265
    %p267 = scmp.ne.s32.totalorder %s253, %s254
    %p268 = scmp.eq.s32.totalorder %s26, 1
    %p269 = por %p267, %p268
    %p271 = scmp.ne.s32.totalorder %s254, %s270
    %p272 = scmp.eq.s32.totalorder %s26, 0
    %p273 = por %p271, %p272
    %s274 = ssub.s32 %s20, %s27
    %p275 = scmp.eq.s32.totalorder %s274, 0
    %s277 = sadd.s32 %s276, 1
    %s278 = scalar_select %p275, %s276, %s277
    %p281 = pneg %p275
    %p282 = scmp.eq.s32.totalorder %s20, 1
    %p283 = por %p281, %p282
    %p284 = scmp.ne.s32.totalorder %s276, %s279
    %p285 = scmp.eq.s32.totalorder %s20, 0
    %p286 = por %p284, %p285
    %p287 = scmp.ne.s32.totalorder %s276, %s279
    %p288 = scmp.eq.s32.totalorder %s25, 1
    %p289 = por %p287, %p288
    %p290 = scmp.ne.s32.totalorder %s279, %s280
    %p291 = scmp.eq.s32.totalorder %s25, 0
    %p292 = por %p290, %p291
    %p293 = scmp.ne.s32.totalorder %s279, %s280
    %p294 = scmp.eq.s32.totalorder %s26, 1
    %p295 = por %p293, %p294
    %p297 = scmp.ne.s32.totalorder %s280, %s296
    %p298 = scmp.eq.s32.totalorder %s26, 0
    %p299 = por %p297, %p298
    %p300 = scmp.le.s32.totalorder 1, %s20
    %p301 = scmp.lt.s32.totalorder %s20, 3
    %p302 = pnand %p300, %p301
    %p303 = pneg %p302
    // Predicated region
    $region9: #{continuous_mlp_actor_forward.1} parent=5 // pred_check
      _
    $region10: #{continuous_mlp_actor_forward.1} parent=5 // pred_check_branch
      %305 = sbr.rel (%p302) target = $region12
    $region11: #{continuous_mlp_actor_forward.1} parent=5 // pred_region
      %s306 = ssub.s32 %s20, 1
      // Predicated region
      $region13: #{continuous_mlp_actor_forward.1} parent=11 // pred_check
        %p307 = pneg %p93
      $region14: #{continuous_mlp_actor_forward.1} parent=11 // pred_check_branch
        %309 = sbr.rel (%p307) target = $region16
      $region15: #{continuous_mlp_actor_forward.1} parent=11 // pred_region
        _
      $region16: #{continuous_mlp_actor_forward.1} parent=11 // pred_fallthru
        _
      // Predicated region
      $region17: #{continuous_mlp_actor_forward.1} parent=11 // pred_check
        %p310 = pneg %p114
      $region18: #{continuous_mlp_actor_forward.1} parent=11 // pred_check_branch
        %312 = sbr.rel (%p310) target = $region20
      $region19: #{continuous_mlp_actor_forward.1} parent=11 // pred_region
        _
      $region20: #{continuous_mlp_actor_forward.1} parent=11 // pred_fallthru
        _
      // Predicated region
      $region21: #{continuous_mlp_actor_forward.1} parent=11 // pred_check
        %p313 = pneg %p135
      $region22: #{continuous_mlp_actor_forward.1} parent=11 // pred_check_branch
        %315 = sbr.rel (%p313) target = $region24
      $region23: #{continuous_mlp_actor_forward.1} parent=11 // pred_region
        _
      $region24: #{continuous_mlp_actor_forward.1} parent=11 // pred_fallthru
        _
      // Predicated region
      $region25: #{continuous_mlp_actor_forward.1} parent=11 // pred_check
        %p316 = pneg %p156
      $region26: #{continuous_mlp_actor_forward.1} parent=11 // pred_check_branch
        %318 = sbr.rel (%p316) target = $region28
      $region27: #{continuous_mlp_actor_forward.1} parent=11 // pred_region
        _
      $region28: #{continuous_mlp_actor_forward.1} parent=11 // pred_fallthru
        _
      // Predicated region
      $region29: #{continuous_mlp_actor_forward.1} parent=11 // pred_check
        %p319 = pneg %p177
      $region30: #{continuous_mlp_actor_forward.1} parent=11 // pred_check_branch
        %321 = sbr.rel (%p319) target = $region32
      $region31: #{continuous_mlp_actor_forward.1} parent=11 // pred_region
        _
      $region32: #{continuous_mlp_actor_forward.1} parent=11 // pred_fallthru
        _
      // Predicated region
      $region33: #{continuous_mlp_actor_forward.1} parent=11 // pred_check
        %p322 = pneg %p198
      $region34: #{continuous_mlp_actor_forward.1} parent=11 // pred_check_branch
        %324 = sbr.rel (%p322) target = $region36
      $region35: #{continuous_mlp_actor_forward.1} parent=11 // pred_region
        _
      $region36: #{continuous_mlp_actor_forward.1} parent=11 // pred_fallthru
        _
      // Predicated region
      $region37: #{continuous_mlp_actor_forward.1} parent=11 // pred_check
        %p325 = pneg %p219
      $region38: #{continuous_mlp_actor_forward.1} parent=11 // pred_check_branch
        %327 = sbr.rel (%p325) target = $region40
      $region39: #{continuous_mlp_actor_forward.1} parent=11 // pred_region
        _
      $region40: #{continuous_mlp_actor_forward.1} parent=11 // pred_fallthru
        _
      // Predicated region
      $region41: #{continuous_mlp_actor_forward.1} parent=11 // pred_check
        %p328 = pneg %p240
      $region42: #{continuous_mlp_actor_forward.1} parent=11 // pred_check_branch
        %330 = sbr.rel (%p328) target = $region44
      $region43: #{continuous_mlp_actor_forward.1} parent=11 // pred_region
        _
      $region44: #{continuous_mlp_actor_forward.1} parent=11 // pred_fallthru
        _
    $region12: #{continuous_mlp_actor_forward.1} parent=5 // pred_fallthru
      _
    %p331 = scmp.lt.s32.totalorder %s20, 2
    // Predicated region
    $region45: #{continuous_mlp_actor_forward.1} parent=5 // pred_check
      %p332 = pneg %p331
    $region46: #{continuous_mlp_actor_forward.1} parent=5 // pred_check_branch
      %334 = sbr.rel (%p332) target = $region48
    $region47: #{continuous_mlp_actor_forward.1} parent=5 // pred_region
      // Predicated region
      $region49: #{continuous_mlp_actor_forward.1} parent=47 // pred_check
        %p335 = pneg %p40
      $region50: #{continuous_mlp_actor_forward.1} parent=47 // pred_check_branch
        %337 = sbr.rel (%p335) target = $region52
      $region51: #{continuous_mlp_actor_forward.1} parent=47 // pred_region
        %s338 = smul.u32 16, %s20
        %p339 = scmp.lt.s32.totalorder %s338, 31
        %s340 = scalar_select %p339, %s338, 31
        %s341 = smul.addr %s340, 8
        %s342 = scalar_lea.vmem %s0, %s341
        %s343 = smul.u32 16, %s20
      $region52: #{continuous_mlp_actor_forward.1} parent=47 // pred_fallthru
        _
      // Predicated region
      $region53: #{continuous_mlp_actor_forward.1} parent=47 // pred_check
        %p344 = pneg %p66
      $region54: #{continuous_mlp_actor_forward.1} parent=47 // pred_check_branch
        %346 = sbr.rel (%p344) target = $region56
      $region55: #{continuous_mlp_actor_forward.1} parent=47 // pred_region
        %s347 = smul.u32 16, %s20
        %p348 = scmp.lt.s32.totalorder %s347, 31
        %s349 = scalar_select %p348, %s347, 31
        %s350 = smul.addr %s349, 8
        %s351 = scalar_lea.vmem %s1, %s350
        %s352 = smul.u32 16, %s20
      $region56: #{continuous_mlp_actor_forward.1} parent=47 // pred_fallthru
        _
    $region48: #{continuous_mlp_actor_forward.1} parent=5 // pred_fallthru
      _
    %p353 = scmp.le.s32.totalorder 1, %s20
    %p354 = scmp.lt.s32.totalorder %s20, 3
    %p355 = pnand %p353, %p354
    %p356 = pneg %p355
    // Predicated region
    $region57: #{continuous_mlp_actor_forward.1} parent=5 // pred_check
      _
    $region58: #{continuous_mlp_actor_forward.1} parent=5 // pred_check_branch
      %358 = sbr.rel (%p355) target = $region60
    $region59: #{continuous_mlp_actor_forward.1} parent=5 // pred_region
      %s359 = ssub.s32 %s20, 1
      %s360 = smul.u32 16, %s25
      %p361 = scmp.lt.s32.totalorder %s360, 31
      %s362 = scalar_select %p361, %s360, 31
      %s363 = smul.addr %s362, 8
      %s364 = scalar_lea.vmem %s0, %s363
      %p365 = pneg %p46
      %p366 = pneg %p43
      %s367 = smul.u32 16, %s25
      %p368 = scmp.lt.s32.totalorder %s367, 31
      %s369 = scalar_select %p368, %s367, 31
      %s370 = smul.addr %s369, 8
      %s371 = scalar_lea.vmem %s1, %s370
      %p372 = pneg %p72
      %p373 = pneg %p69
      %p374 = pneg %p93
      %p375 = pneg %p90
      %p376 = pneg %p114
      %p377 = pneg %p111
      %p378 = pneg %p135
      %p379 = pneg %p132
      %p380 = pneg %p156
      %p381 = pneg %p153
      %p382 = pneg %p177
      %p383 = pneg %p174
      %p384 = pneg %p198
      %p385 = pneg %p195
      %p386 = pneg %p219
      %p387 = pneg %p216
      %p388 = pneg %p240
      %p389 = pneg %p237
      %p390 = pneg %p266
      %p391 = pneg %p263
      %s392 = smul.u32 16, %s25
      %p393 = scmp.lt.s32.totalorder %s392, 31
      %s394 = scalar_select %p393, %s392, 31
      %s395 = smul.addr %s394, 8
      %s396 = scalar_lea.vmem %s10, %s395
      %p397 = pneg %p292
      %p398 = pneg %p289
      %s399 = smul.u32 16, %s25
      %p400 = scmp.lt.s32.totalorder %s399, 31
      %s401 = scalar_select %p400, %s399, 31
      %s402 = smul.addr %s401, 8
      %s403 = scalar_lea.vmem %s11, %s402
      %s404 = smul.u32 16, %s25
      %p405 = scmp.lt.s32.totalorder %s404, 31
      %s406 = scalar_select %p405, %s404, 31
      %s407 = smul.addr %s406, 8
      %s408 = scalar_lea.vmem %s0, %s407
      %s409 = smul.u32 16, %s25
      %s410 = smul.u32 16, %s25
      %p411 = scmp.lt.s32.totalorder %s410, 31
      %s412 = scalar_select %p411, %s410, 31
      %s413 = smul.addr %s412, 8
      %s414 = scalar_lea.vmem %s1, %s413
      %s415 = smul.u32 16, %s25
      %s416 = smul.u32 16, %s25
      %p417 = scmp.lt.s32.totalorder %s416, 31
      %s418 = scalar_select %p417, %s416, 31
      %s419 = smul.addr %s418, 8
      %s420 = scalar_lea.vmem %s10, %s419
      %s421 = smul.u32 16, %s25
      %s422 = smul.u32 16, %s25
      %p423 = scmp.lt.s32.totalorder %s422, 31
      %s424 = scalar_select %p423, %s422, 31
      %s425 = smul.addr %s424, 8
      %s426 = scalar_lea.vmem %s11, %s425
      %s427 = smul.u32 16, %s25
      %v428 = vld [vmem:[%s408] sm:$0xff]
      %v429 = vld [vmem:[%s408 + $0x8] sm:$0xff]
      %v430 = vld [vmem:[%s408 + $0x10] sm:$0xff]
      %v431 = vld [vmem:[%s408 + $0x18] sm:$0xff]
      %v432 = vld [vmem:[%s408 + $0x20] sm:$0xff]
      %v433 = vld [vmem:[%s408 + $0x28] sm:$0xff]
      %v434 = vld [vmem:[%s408 + $0x30] sm:$0xff]
      %v435 = vld [vmem:[%s408 + $0x38] sm:$0xff]
      %v436 = vld [vmem:[%s408 + $0x40] sm:$0xff]
      %v437 = vld [vmem:[%s408 + $0x48] sm:$0xff]
      %v438 = vld [vmem:[%s408 + $0x50] sm:$0xff]
      %v439 = vld [vmem:[%s408 + $0x58] sm:$0xff]
      %v440 = vld [vmem:[%s408 + $0x60] sm:$0xff]
      %v441 = vld [vmem:[%s408 + $0x68] sm:$0xff]
      %v442 = vld [vmem:[%s408 + $0x70] sm:$0xff]
      %v443 = vld [vmem:[%s408 + $0x78] sm:$0xff]
      %v444 = vld [vmem:[%s2] sm:$0xff]
      %v445 = vld [vmem:[%s2 + $0x8] sm:$0xff]
      %v446 = vld [vmem:[%s3] sm:$0x1]
      %v448 = vlaneseq
      %v449 = vshrl.u32 %v448, 7
      %v450 = vsub.s32 0, %v449
      %v451 = vrot.slane %v446, %v450
      %vm453 = vcmask 130048
      %v455 = vsel %vm453, %v428, 0
      %v458 = vsel %vm453, %v429, 0
      %v461 = vsel %vm453, %v430, 0
      %v464 = vsel %vm453, %v431, 0
      %v467 = vsel %vm453, %v432, 0
      %v470 = vsel %vm453, %v433, 0
      %v473 = vsel %vm453, %v434, 0
      %v476 = vsel %vm453, %v435, 0
      %v479 = vsel %vm453, %v436, 0
      %v482 = vsel %vm453, %v437, 0
      %v485 = vsel %vm453, %v438, 0
      %v488 = vsel %vm453, %v439, 0
      %v491 = vsel %vm453, %v440, 0
      %v494 = vsel %vm453, %v441, 0
      %v497 = vsel %vm453, %v442, 0
      %v500 = vsel %vm453, %v443, 0
      %502 = vmatprep.subr.mxu0 0.0
      %503 = vmatpush1.msra.mxu0 %v444
      %504 = vmatprep.subr.mxu0 0.0
      %505 = vmatpush1.msra.mxu0 %v445
      %506 = vmatprep.subr.mxu0 0.0
      %507 = vmatpush1.msra.mxu0 0.0
      %508 = vmatprep.subr.mxu0 0.0
      %509 = vmatpush1.msra.mxu0 0.0
      %510 = vmatprep.subr.mxu0 0.0
      %511 = vmatpush1.msra.mxu0 0.0
      %512 = vmatprep.subr.mxu0 0.0
      %513 = vmatpush1.msra.mxu0 0.0
      %514 = vmatprep.subr.mxu0 0.0
      %515 = vmatpush1.msra.mxu0 0.0
      %516 = vmatprep.subr.mxu0 0.0
      %517 = vmatpush1.msra.mxu0 0.0
      %518 = vmatprep.subr.mxu0 0.0
      %519 = vmatpush1.msra.mxu0 0.0
      %520 = vmatprep.subr.mxu0 0.0
      %521 = vmatpush1.msra.mxu0 0.0
      %522 = vmatprep.subr.mxu0 0.0
      %523 = vmatpush1.msra.mxu0 0.0
      %524 = vmatprep.subr.mxu0 0.0
      %525 = vmatpush1.msra.mxu0 0.0
      %526 = vmatprep.subr.mxu0 0.0
      %527 = vmatpush1.msra.mxu0 0.0
      %528 = vmatprep.subr.mxu0 0.0
      %529 = vmatpush1.msra.mxu0 0.0
      %530 = vmatprep.subr.mxu0 0.0
      %531 = vmatpush1.msra.mxu0 0.0
      %532 = vmatprep.subr.mxu0 0.0
      %533 = vmatpush1.msra.mxu0 0.0
      %534 = vmatprep.subr.mxu0 0.0
      %535 = vmatpush1.msra.mxu0 0.0
      %536 = vmatprep.subr.mxu0 0.0
      %537 = vmatpush1.msra.mxu0 0.0
      %538 = vmatprep.subr.mxu0 0.0
      %539 = vmatpush1.msra.mxu0 0.0
      %540 = vmatprep.subr.mxu0 0.0
      %541 = vmatpush1.msra.mxu0 0.0
      %542 = vmatprep.subr.mxu0 0.0
      %543 = vmatpush1.msra.mxu0 0.0
      %544 = vmatprep.subr.mxu0 0.0
      %545 = vmatpush1.msra.mxu0 0.0
      %546 = vmatprep.subr.mxu0 0.0
      %547 = vmatpush1.msra.mxu0 0.0
      %548 = vmatprep.subr.mxu0 0.0
      %549 = vmatpush1.msra.mxu0 0.0
      %550 = vmatprep.subr.mxu0 0.0
      %551 = vmatpush1.msra.mxu0 0.0
      %552 = vmatprep.subr.mxu0 0.0
      %553 = vmatpush1.msra.mxu0 0.0
      %554 = vmatprep.subr.mxu0 0.0
      %555 = vmatpush1.msra.mxu0 0.0
      %556 = vmatprep.subr.mxu0 0.0
      %557 = vmatpush1.msra.mxu0 0.0
      %558 = vmatprep.subr.mxu0 0.0
      %559 = vmatpush1.msra.mxu0 0.0
      %560 = vmatprep.subr.mxu0 0.0
      %561 = vmatpush1.msra.mxu0 0.0
      %562 = vmatprep.subr.mxu0 0.0
      %563 = vmatpush1.msra.mxu0 0.0
      %564 = vmatprep.subr.mxu0 0.0
      %565 = vmatpush1.msra.mxu0 0.0
      %566 = vmatprep.mubr.f32.mxu0 0.0
      %567 = vmatmul.mubr.f32.gmra.mrb[0].mxu0 %v455
      %v568 = vpop.f32.mrb[0].mxu0
      %v569 = vadd.f32 %v451, %v568
      %v570 = vpop.f32.mrb[0].mxu0
      %571 = vmatprep.mubr.f32.mxu0 0.0
      %572 = vmatmul.mubr.f32.gmra.mrb[0].mxu0 %v458
      %v573 = vpop.f32.mrb[0].mxu0
      %v574 = vadd.f32 %v451, %v573
      %v575 = vpop.f32.mrb[0].mxu0
      %576 = vmatprep.mubr.f32.mxu0 0.0
      %577 = vmatmul.mubr.f32.gmra.mrb[0].mxu0 %v461
      %v578 = vpop.f32.mrb[0].mxu0
      %v579 = vadd.f32 %v451, %v578
      %v580 = vpop.f32.mrb[0].mxu0
      %581 = vmatprep.mubr.f32.mxu0 0.0
      %582 = vmatmul.mubr.f32.gmra.mrb[0].mxu0 %v464
      %v583 = vpop.f32.mrb[0].mxu0
      %v584 = vadd.f32 %v451, %v583
      %v585 = vpop.f32.mrb[0].mxu0
      %586 = vmatprep.mubr.f32.mxu0 0.0
      %587 = vmatmul.mubr.f32.gmra.mrb[0].mxu0 %v467
      %v588 = vpop.f32.mrb[0].mxu0
      %v589 = vadd.f32 %v451, %v588
      %v590 = vpop.f32.mrb[0].mxu0
      %591 = vmatprep.mubr.f32.mxu0 0.0
      %592 = vmatmul.mubr.f32.gmra.mrb[0].mxu0 %v470
      %v593 = vpop.f32.mrb[0].mxu0
      %v594 = vadd.f32 %v451, %v593
      %v595 = vpop.f32.mrb[0].mxu0
      %596 = vmatprep.mubr.f32.mxu0 0.0
      %597 = vmatmul.mubr.f32.gmra.mrb[0].mxu0 %v473
      %v598 = vpop.f32.mrb[0].mxu0
      %v599 = vadd.f32 %v451, %v598
      %v600 = vpop.f32.mrb[0].mxu0
      %601 = vmatprep.mubr.f32.mxu0 0.0
      %602 = vmatmul.mubr.f32.gmra.mrb[0].mxu0 %v476
      %v603 = vpop.f32.mrb[0].mxu0
      %v604 = vadd.f32 %v451, %v603
      %v605 = vpop.f32.mrb[0].mxu0
      %606 = vmatprep.mubr.f32.mxu0 0.0
      %607 = vmatmul.mubr.f32.gmra.mrb[0].mxu0 %v479
      %v608 = vpop.f32.mrb[0].mxu0
      %v609 = vadd.f32 %v451, %v608
      %v610 = vpop.f32.mrb[0].mxu0
      %611 = vmatprep.mubr.f32.mxu0 0.0
      %612 = vmatmul.mubr.f32.gmra.mrb[0].mxu0 %v482
      %v613 = vpop.f32.mrb[0].mxu0
      %v614 = vadd.f32 %v451, %v613
      %v615 = vpop.f32.mrb[0].mxu0
      %616 = vmatprep.mubr.f32.mxu0 0.0
      %617 = vmatmul.mubr.f32.gmra.mrb[0].mxu0 %v485
      %v618 = vpop.f32.mrb[0].mxu0
      %v619 = vadd.f32 %v451, %v618
      %v620 = vpop.f32.mrb[0].mxu0
      %621 = vmatprep.mubr.f32.mxu0 0.0
      %622 = vmatmul.mubr.f32.gmra.mrb[0].mxu0 %v488
      %v623 = vpop.f32.mrb[0].mxu0
      %v624 = vadd.f32 %v451, %v623
      %v625 = vpop.f32.mrb[0].mxu0
      %626 = vmatprep.mubr.f32.mxu0 0.0
      %627 = vmatmul.mubr.f32.gmra.mrb[0].mxu0 %v491
      %v628 = vpop.f32.mrb[0].mxu0
      %v629 = vadd.f32 %v451, %v628
      %v630 = vpop.f32.mrb[0].mxu0
      %631 = vmatprep.mubr.f32.mxu0 0.0
      %632 = vmatmul.mubr.f32.gmra.mrb[0].mxu0 %v494
      %v633 = vpop.f32.mrb[0].mxu0
      %v634 = vadd.f32 %v451, %v633
      %v635 = vpop.f32.mrb[0].mxu0
      %636 = vmatprep.mubr.f32.mxu0 0.0
      %637 = vmatmul.mubr.f32.gmra.mrb[0].mxu0 %v497
      %v638 = vpop.f32.mrb[0].mxu0
      %v639 = vadd.f32 %v451, %v638
      %v640 = vpop.f32.mrb[0].mxu0
      %641 = vmatprep.mubr.f32.mxu0 0.0
      %642 = vmatmul.mubr.f32.gmra.mrb[0].mxu0 %v500
      %v643 = vpop.f32.mrb[0].mxu0
      %v644 = vadd.f32 %v451, %v643
      %v645 = vpop.f32.mrb[0].mxu0
      %646 = vdwg.mxu0
      %v647 = vtanh.pop %v569
      %v648 = vtanh.pop %v574
      %v649 = vtanh.pop %v579
      %v650 = vtanh.pop %v584
      %v651 = vtanh.pop %v589
      %v652 = vtanh.pop %v594
      %v653 = vtanh.pop %v599
      %v654 = vtanh.pop %v604
      %v655 = vtanh.pop %v609
      %v656 = vtanh.pop %v614
      %v657 = vtanh.pop %v619
      %v658 = vtanh.pop %v624
      %v659 = vtanh.pop %v629
      %v660 = vtanh.pop %v634
      %v661 = vtanh.pop %v639
      %v662 = vtanh.pop %v644
      %v663 = vld [vmem:[%s4] sm:$0xff]
      %v664 = vld [vmem:[%s4 + $0x8] sm:$0xff]
      %v665 = vld [vmem:[%s4 + $0x10] sm:$0xff]
      %v666 = vld [vmem:[%s4 + $0x18] sm:$0xff]
      %v667 = vld [vmem:[%s4 + $0x20] sm:$0xff]
      %v668 = vld [vmem:[%s4 + $0x28] sm:$0xff]
      %v669 = vld [vmem:[%s4 + $0x30] sm:$0xff]
      %v670 = vld [vmem:[%s4 + $0x38] sm:$0xff]
      %v671 = vld [vmem:[%s4 + $0x40] sm:$0xff]
      %v672 = vld [vmem:[%s4 + $0x48] sm:$0xff]
      %v673 = vld [vmem:[%s4 + $0x50] sm:$0xff]
      %v674 = vld [vmem:[%s4 + $0x58] sm:$0xff]
      %v675 = vld [vmem:[%s4 + $0x60] sm:$0xff]
      %v676 = vld [vmem:[%s4 + $0x68] sm:$0xff]
      %v677 = vld [vmem:[%s4 + $0x70] sm:$0xff]
      %v678 = vld [vmem:[%s4 + $0x78] sm:$0xff]
      %v679 = vld [vmem:[%s5] sm:$0x1]
      %v681 = vlaneseq
      %v682 = vshrl.u32 %v681, 7
      %v683 = vsub.s32 0, %v682
      %v684 = vrot.slane %v679, %v683
      %686 = vmatprep.subr.mxu0 0.0
      %687 = vmatpush1.msra.mxu0 %v663
      %688 = vmatprep.subr.mxu0 0.0
      %689 = vmatpush1.msra.mxu0 %v664
      %690 = vmatprep.subr.mxu0 0.0
      %691 = vmatpush1.msra.mxu0 %v665
      %692 = vmatprep.subr.mxu0 0.0
      %693 = vmatpush1.msra.mxu0 %v666
      %694 = vmatprep.subr.mxu0 0.0
      %695 = vmatpush1.msra.mxu0 %v667
      %696 = vmatprep.subr.mxu0 0.0
      %697 = vmatpush1.msra.mxu0 %v668
      %698 = vmatprep.subr.mxu0 0.0
      %699 = vmatpush1.msra.mxu0 %v669
      %700 = vmatprep.subr.mxu0 0.0
      %701 = vmatpush1.msra.mxu0 %v670
      %702 = vmatprep.subr.mxu0 0.0
      %703 = vmatpush1.msra.mxu0 %v671
      %704 = vmatprep.subr.mxu0 0.0
      %705 = vmatpush1.msra.mxu0 %v672
      %706 = vmatprep.subr.mxu0 0.0
      %707 = vmatpush1.msra.mxu0 %v673
      %708 = vmatprep.subr.mxu0 0.0
      %709 = vmatpush1.msra.mxu0 %v674
      %710 = vmatprep.subr.mxu0 0.0
      %711 = vmatpush1.msra.mxu0 %v675
      %712 = vmatprep.subr.mxu0 0.0
      %713 = vmatpush1.msra.mxu0 %v676
      %714 = vmatprep.subr.mxu0 0.0
      %715 = vmatpush1.msra.mxu0 %v677
      %716 = vmatprep.subr.mxu0 0.0
      %717 = vmatpush1.msra.mxu0 %v678
      %718 = vmatprep.subr.mxu0 0.0
      %719 = vmatpush1.msra.mxu0 0.0
      %720 = vmatprep.subr.mxu0 0.0
      %721 = vmatpush1.msra.mxu0 0.0
      %722 = vmatprep.subr.mxu0 0.0
      %723 = vmatpush1.msra.mxu0 0.0
      %724 = vmatprep.subr.mxu0 0.0
      %725 = vmatpush1.msra.mxu0 0.0
      %726 = vmatprep.subr.mxu0 0.0
      %727 = vmatpush1.msra.mxu0 0.0
      %728 = vmatprep.subr.mxu0 0.0
      %729 = vmatpush1.msra.mxu0 0.0
      %730 = vmatprep.subr.mxu0 0.0
      %731 = vmatpush1.msra.mxu0 0.0
      %732 = vmatprep.subr.mxu0 0.0
      %733 = vmatpush1.msra.mxu0 0.0
      %734 = vmatprep.subr.mxu0 0.0
      %735 = vmatpush1.msra.mxu0 0.0
      %736 = vmatprep.subr.mxu0 0.0
      %737 = vmatpush1.msra.mxu0 0.0
      %738 = vmatprep.subr.mxu0 0.0
      %739 = vmatpush1.msra.mxu0 0.0
      %740 = vmatprep.subr.mxu0 0.0
      %741 = vmatpush1.msra.mxu0 0.0
      %742 = vmatprep.subr.mxu0 0.0
      %743 = vmatpush1.msra.mxu0 0.0
      %744 = vmatprep.subr.mxu0 0.0
      %745 = vmatpush1.msra.mxu0 0.0
      %746 = vmatprep.subr.mxu0 0.0
      %747 = vmatpush1.msra.mxu0 0.0
      %748 = vmatprep.subr.mxu0 0.0
      %749 = vmatpush1.msra.mxu0 0.0
      %750 = vmatprep.mubr.f32.mxu0 0.0
      %751 = vmatmul.mubr.f32.gmra.mrb[0].mxu0 %v647
      %v752 = vpop.f32.mrb[0].mxu0
      %v753 = vadd.f32 %v684, %v752
      %v754 = vpop.f32.mrb[0].mxu0
      %755 = vmatprep.mubr.f32.mxu0 0.0
      %756 = vmatmul.mubr.f32.gmra.mrb[0].mxu0 %v648
      %v757 = vpop.f32.mrb[0].mxu0
      %v758 = vadd.f32 %v684, %v757
      %v759 = vpop.f32.mrb[0].mxu0
      %760 = vmatprep.mubr.f32.mxu0 0.0
      %761 = vmatmul.mubr.f32.gmra.mrb[0].mxu0 %v649
      %v762 = vpop.f32.mrb[0].mxu0
      %v763 = vadd.f32 %v684, %v762
      %v764 = vpop.f32.mrb[0].mxu0
      %765 = vmatprep.mubr.f32.mxu0 0.0
      %766 = vmatmul.mubr.f32.gmra.mrb[0].mxu0 %v650
      %v767 = vpop.f32.mrb[0].mxu0
      %v768 = vadd.f32 %v684, %v767
      %v769 = vpop.f32.mrb[0].mxu0
      %770 = vmatprep.mubr.f32.mxu0 0.0
      %771 = vmatmul.mubr.f32.gmra.mrb[0].mxu0 %v651
      %v772 = vpop.f32.mrb[0].mxu0
      %v773 = vadd.f32 %v684, %v772
      %v774 = vpop.f32.mrb[0].mxu0
      %775 = vmatprep.mubr.f32.mxu0 0.0
      %776 = vmatmul.mubr.f32.gmra.mrb[0].mxu0 %v652
      %v777 = vpop.f32.mrb[0].mxu0
      %v778 = vadd.f32 %v684, %v777
      %v779 = vpop.f32.mrb[0].mxu0
      %780 = vmatprep.mubr.f32.mxu0 0.0
      %781 = vmatmul.mubr.f32.gmra.mrb[0].mxu0 %v653
      %v782 = vpop.f32.mrb[0].mxu0
      %v783 = vadd.f32 %v684, %v782
      %v784 = vpop.f32.mrb[0].mxu0
      %785 = vmatprep.mubr.f32.mxu0 0.0
      %786 = vmatmul.mubr.f32.gmra.mrb[0].mxu0 %v654
      %v787 = vpop.f32.mrb[0].mxu0
      %v788 = vadd.f32 %v684, %v787
      %v789 = vpop.f32.mrb[0].mxu0
      %790 = vmatprep.mubr.f32.mxu0 0.0
      %791 = vmatmul.mubr.f32.gmra.mrb[0].mxu0 %v655
      %v792 = vpop.f32.mrb[0].mxu0
      %v793 = vadd.f32 %v684, %v792
      %v794 = vpop.f32.mrb[0].mxu0
      %795 = vmatprep.mubr.f32.mxu0 0.0
      %796 = vmatmul.mubr.f32.gmra.mrb[0].mxu0 %v656
      %v797 = vpop.f32.mrb[0].mxu0
      %v798 = vadd.f32 %v684, %v797
      %v799 = vpop.f32.mrb[0].mxu0
      %800 = vmatprep.mubr.f32.mxu0 0.0
      %801 = vmatmul.mubr.f32.gmra.mrb[0].mxu0 %v657
      %v802 = vpop.f32.mrb[0].mxu0
      %v803 = vadd.f32 %v684, %v802
      %v804 = vpop.f32.mrb[0].mxu0
      %805 = vmatprep.mubr.f32.mxu0 0.0
      %806 = vmatmul.mubr.f32.gmra.mrb[0].mxu0 %v658
      %v807 = vpop.f32.mrb[0].mxu0
      %v808 = vadd.f32 %v684, %v807
      %v809 = vpop.f32.mrb[0].mxu0
      %810 = vmatprep.mubr.f32.mxu0 0.0
      %811 = vmatmul.mubr.f32.gmra.mrb[0].mxu0 %v659
      %v812 = vpop.f32.mrb[0].mxu0
      %v813 = vadd.f32 %v684, %v812
      %v814 = vpop.f32.mrb[0].mxu0
      %815 = vmatprep.mubr.f32.mxu0 0.0
      %816 = vmatmul.mubr.f32.gmra.mrb[0].mxu0 %v660
      %v817 = vpop.f32.mrb[0].mxu0
      %v818 = vadd.f32 %v684, %v817
      %v819 = vpop.f32.mrb[0].mxu0
      %820 = vmatprep.mubr.f32.mxu0 0.0
      %821 = vmatmul.mubr.f32.gmra.mrb[0].mxu0 %v661
      %v822 = vpop.f32.mrb[0].mxu0
      %v823 = vadd.f32 %v684, %v822
      %v824 = vpop.f32.mrb[0].mxu0
      %825 = vmatprep.mubr.f32.mxu0 0.0
      %826 = vmatmul.mubr.f32.gmra.mrb[0].mxu0 %v662
      %v827 = vpop.f32.mrb[0].mxu0
      %v828 = vadd.f32 %v684, %v827
      %v829 = vpop.f32.mrb[0].mxu0
      %830 = vdwg.mxu0
      %v831 = vtanh.pop %v753
      %v832 = vtanh.pop %v758
      %v833 = vtanh.pop %v763
      %v834 = vtanh.pop %v768
      %v835 = vtanh.pop %v773
      %v836 = vtanh.pop %v778
      %v837 = vtanh.pop %v783
      %v838 = vtanh.pop %v788
      %v839 = vtanh.pop %v793
      %v840 = vtanh.pop %v798
      %v841 = vtanh.pop %v803
      %v842 = vtanh.pop %v808
      %v843 = vtanh.pop %v813
      %v844 = vtanh.pop %v818
      %v845 = vtanh.pop %v823
      %v846 = vtanh.pop %v828
      %v847 = vld [vmem:[%s6] sm:$0xff]
      %v848 = vld [vmem:[%s6 + $0x8] sm:$0xff]
      %v849 = vld [vmem:[%s6 + $0x10] sm:$0xff]
      %v850 = vld [vmem:[%s6 + $0x18] sm:$0xff]
      %v851 = vld [vmem:[%s6 + $0x20] sm:$0xff]
      %v852 = vld [vmem:[%s6 + $0x28] sm:$0xff]
      %v853 = vld [vmem:[%s6 + $0x30] sm:$0xff]
      %v854 = vld [vmem:[%s6 + $0x38] sm:$0xff]
      %v855 = vld [vmem:[%s6 + $0x40] sm:$0xff]
      %v856 = vld [vmem:[%s6 + $0x48] sm:$0xff]
      %v857 = vld [vmem:[%s6 + $0x50] sm:$0xff]
      %v858 = vld [vmem:[%s6 + $0x58] sm:$0xff]
      %v859 = vld [vmem:[%s6 + $0x60] sm:$0xff]
      %v860 = vld [vmem:[%s6 + $0x68] sm:$0xff]
      %v861 = vld [vmem:[%s6 + $0x70] sm:$0xff]
      %v862 = vld [vmem:[%s6 + $0x78] sm:$0xff]
      %v863 = vld [vmem:[%s7] sm:$0x1]
      %v865 = vlaneseq
      %v866 = vshrl.u32 %v865, 7
      %v867 = vsub.s32 0, %v866
      %v868 = vrot.slane %v863, %v867
      %870 = vmatprep.subr.mxu0 0.0
      %871 = vmatpush1.msra.mxu0 %v847
      %872 = vmatprep.subr.mxu0 0.0
      %873 = vmatpush1.msra.mxu0 %v848
      %874 = vmatprep.subr.mxu0 0.0
      %875 = vmatpush1.msra.mxu0 %v849
      %876 = vmatprep.subr.mxu0 0.0
      %877 = vmatpush1.msra.mxu0 %v850
      %878 = vmatprep.subr.mxu0 0.0
      %879 = vmatpush1.msra.mxu0 %v851
      %880 = vmatprep.subr.mxu0 0.0
      %881 = vmatpush1.msra.mxu0 %v852
      %882 = vmatprep.subr.mxu0 0.0
      %883 = vmatpush1.msra.mxu0 %v853
      %884 = vmatprep.subr.mxu0 0.0
      %885 = vmatpush1.msra.mxu0 %v854
      %886 = vmatprep.subr.mxu0 0.0
      %887 = vmatpush1.msra.mxu0 %v855
      %888 = vmatprep.subr.mxu0 0.0
      %889 = vmatpush1.msra.mxu0 %v856
      %890 = vmatprep.subr.mxu0 0.0
      %891 = vmatpush1.msra.mxu0 %v857
      %892 = vmatprep.subr.mxu0 0.0
      %893 = vmatpush1.msra.mxu0 %v858
      %894 = vmatprep.subr.mxu0 0.0
      %895 = vmatpush1.msra.mxu0 %v859
      %896 = vmatprep.subr.mxu0 0.0
      %897 = vmatpush1.msra.mxu0 %v860
      %898 = vmatprep.subr.mxu0 0.0
      %899 = vmatpush1.msra.mxu0 %v861
      %900 = vmatprep.subr.mxu0 0.0
      %901 = vmatpush1.msra.mxu0 %v862
      %902 = vmatprep.subr.mxu0 0.0
      %903 = vmatpush1.msra.mxu0 0.0
      %904 = vmatprep.subr.mxu0 0.0
      %905 = vmatpush1.msra.mxu0 0.0
      %906 = vmatprep.subr.mxu0 0.0
      %907 = vmatpush1.msra.mxu0 0.0
      %908 = vmatprep.subr.mxu0 0.0
      %909 = vmatpush1.msra.mxu0 0.0
      %910 = vmatprep.subr.mxu0 0.0
      %911 = vmatpush1.msra.mxu0 0.0
      %912 = vmatprep.subr.mxu0 0.0
      %913 = vmatpush1.msra.mxu0 0.0
      %914 = vmatprep.subr.mxu0 0.0
      %915 = vmatpush1.msra.mxu0 0.0
      %916 = vmatprep.subr.mxu0 0.0
      %917 = vmatpush1.msra.mxu0 0.0
      %918 = vmatprep.subr.mxu0 0.0
      %919 = vmatpush1.msra.mxu0 0.0
      %920 = vmatprep.subr.mxu0 0.0
      %921 = vmatpush1.msra.mxu0 0.0
      %922 = vmatprep.subr.mxu0 0.0
      %923 = vmatpush1.msra.mxu0 0.0
      %924 = vmatprep.subr.mxu0 0.0
      %925 = vmatpush1.msra.mxu0 0.0
      %926 = vmatprep.subr.mxu0 0.0
      %927 = vmatpush1.msra.mxu0 0.0
      %928 = vmatprep.subr.mxu0 0.0
      %929 = vmatpush1.msra.mxu0 0.0
      %930 = vmatprep.subr.mxu0 0.0
      %931 = vmatpush1.msra.mxu0 0.0
      %932 = vmatprep.subr.mxu0 0.0
      %933 = vmatpush1.msra.mxu0 0.0
      %934 = vmatprep.mubr.f32.mxu0 0.0
      %935 = vmatmul.mubr.f32.gmra.mrb[0].mxu0 %v831
      %v936 = vpop.f32.mrb[0].mxu0
      %v937 = vadd.f32 %v868, %v936
      %v938 = vpop.f32.mrb[0].mxu0
      %939 = vmatprep.mubr.f32.mxu0 0.0
      %940 = vmatmul.mubr.f32.gmra.mrb[0].mxu0 %v832
      %v941 = vpop.f32.mrb[0].mxu0
      %v942 = vadd.f32 %v868, %v941
      %v943 = vpop.f32.mrb[0].mxu0
      %944 = vmatprep.mubr.f32.mxu0 0.0
      %945 = vmatmul.mubr.f32.gmra.mrb[0].mxu0 %v833
      %v946 = vpop.f32.mrb[0].mxu0
      %v947 = vadd.f32 %v868, %v946
      %v948 = vpop.f32.mrb[0].mxu0
      %949 = vmatprep.mubr.f32.mxu0 0.0
      %950 = vmatmul.mubr.f32.gmra.mrb[0].mxu0 %v834
      %v951 = vpop.f32.mrb[0].mxu0
      %v952 = vadd.f32 %v868, %v951
      %v953 = vpop.f32.mrb[0].mxu0
      %954 = vmatprep.mubr.f32.mxu0 0.0
      %955 = vmatmul.mubr.f32.gmra.mrb[0].mxu0 %v835
      %v956 = vpop.f32.mrb[0].mxu0
      %v957 = vadd.f32 %v868, %v956
      %v958 = vpop.f32.mrb[0].mxu0
      %959 = vmatprep.mubr.f32.mxu0 0.0
      %960 = vmatmul.mubr.f32.gmra.mrb[0].mxu0 %v836
      %v961 = vpop.f32.mrb[0].mxu0
      %v962 = vadd.f32 %v868, %v961
      %v963 = vpop.f32.mrb[0].mxu0
      %964 = vmatprep.mubr.f32.mxu0 0.0
      %965 = vmatmul.mubr.f32.gmra.mrb[0].mxu0 %v837
      %v966 = vpop.f32.mrb[0].mxu0
      %v967 = vadd.f32 %v868, %v966
      %v968 = vpop.f32.mrb[0].mxu0
      %969 = vmatprep.mubr.f32.mxu0 0.0
      %970 = vmatmul.mubr.f32.gmra.mrb[0].mxu0 %v838
      %v971 = vpop.f32.mrb[0].mxu0
      %v972 = vadd.f32 %v868, %v971
      %v973 = vpop.f32.mrb[0].mxu0
      %974 = vmatprep.mubr.f32.mxu0 0.0
      %975 = vmatmul.mubr.f32.gmra.mrb[0].mxu0 %v839
      %v976 = vpop.f32.mrb[0].mxu0
      %v977 = vadd.f32 %v868, %v976
      %v978 = vpop.f32.mrb[0].mxu0
      %979 = vmatprep.mubr.f32.mxu0 0.0
      %980 = vmatmul.mubr.f32.gmra.mrb[0].mxu0 %v840
      %v981 = vpop.f32.mrb[0].mxu0
      %v982 = vadd.f32 %v868, %v981
      %v983 = vpop.f32.mrb[0].mxu0
      %984 = vmatprep.mubr.f32.mxu0 0.0
      %985 = vmatmul.mubr.f32.gmra.mrb[0].mxu0 %v841
      %v986 = vpop.f32.mrb[0].mxu0
      %v987 = vadd.f32 %v868, %v986
      %v988 = vpop.f32.mrb[0].mxu0
      %989 = vmatprep.mubr.f32.mxu0 0.0
      %990 = vmatmul.mubr.f32.gmra.mrb[0].mxu0 %v842
      %v991 = vpop.f32.mrb[0].mxu0
      %v992 = vadd.f32 %v868, %v991
      %v993 = vpop.f32.mrb[0].mxu0
      %994 = vmatprep.mubr.f32.mxu0 0.0
      %995 = vmatmul.mubr.f32.gmra.mrb[0].mxu0 %v843
      %v996 = vpop.f32.mrb[0].mxu0
      %v997 = vadd.f32 %v868, %v996
      %v998 = vpop.f32.mrb[0].mxu0
      %999 = vmatprep.mubr.f32.mxu0 0.0
      %1000 = vmatmul.mubr.f32.gmra.mrb[0].mxu0 %v844
      %v1001 = vpop.f32.mrb[0].mxu0
      %v1002 = vadd.f32 %v868, %v1001
      %v1003 = vpop.f32.mrb[0].mxu0
      %1004 = vmatprep.mubr.f32.mxu0 0.0
      %1005 = vmatmul.mubr.f32.gmra.mrb[0].mxu0 %v845
      %v1006 = vpop.f32.mrb[0].mxu0
      %v1007 = vadd.f32 %v868, %v1006
      %v1008 = vpop.f32.mrb[0].mxu0
      %1009 = vmatprep.mubr.f32.mxu0 0.0
      %1010 = vmatmul.mubr.f32.gmra.mrb[0].mxu0 %v846
      %v1011 = vpop.f32.mrb[0].mxu0
      %v1012 = vadd.f32 %v868, %v1011
      %v1013 = vpop.f32.mrb[0].mxu0
      %1014 = vdwg.mxu0
      %vm1015 = vcmask 64512
      %1016 = vst.msk [vmem:[%s420] sm:$0xff] %vm1015, %v937
      %1017 = vst.msk [vmem:[%s420 + $0x8] sm:$0xff] %vm1015, %v942
      %1018 = vst.msk [vmem:[%s420 + $0x10] sm:$0xff] %vm1015, %v947
      %1019 = vst.msk [vmem:[%s420 + $0x18] sm:$0xff] %vm1015, %v952
      %1020 = vst.msk [vmem:[%s420 + $0x20] sm:$0xff] %vm1015, %v957
      %1021 = vst.msk [vmem:[%s420 + $0x28] sm:$0xff] %vm1015, %v962
      %1022 = vst.msk [vmem:[%s420 + $0x30] sm:$0xff] %vm1015, %v967
      %1023 = vst.msk [vmem:[%s420 + $0x38] sm:$0xff] %vm1015, %v972
      %1024 = vst.msk [vmem:[%s420 + $0x40] sm:$0xff] %vm1015, %v977
      %1025 = vst.msk [vmem:[%s420 + $0x48] sm:$0xff] %vm1015, %v982
      %1026 = vst.msk [vmem:[%s420 + $0x50] sm:$0xff] %vm1015, %v987
      %1027 = vst.msk [vmem:[%s420 + $0x58] sm:$0xff] %vm1015, %v992
      %1028 = vst.msk [vmem:[%s420 + $0x60] sm:$0xff] %vm1015, %v997
      %1029 = vst.msk [vmem:[%s420 + $0x68] sm:$0xff] %vm1015, %v1002
      %1030 = vst.msk [vmem:[%s420 + $0x70] sm:$0xff] %vm1015, %v1007
      %1031 = vst.msk [vmem:[%s420 + $0x78] sm:$0xff] %vm1015, %v1012
      %v1032 = vld [vmem:[%s414] sm:$0xff]
      %v1033 = vld [vmem:[%s414 + $0x8] sm:$0xff]
      %v1034 = vld [vmem:[%s414 + $0x10] sm:$0xff]
      %v1035 = vld [vmem:[%s414 + $0x18] sm:$0xff]
      %v1036 = vld [vmem:[%s414 + $0x20] sm:$0xff]
      %v1037 = vld [vmem:[%s414 + $0x28] sm:$0xff]
      %v1038 = vld [vmem:[%s414 + $0x30] sm:$0xff]
      %v1039 = vld [vmem:[%s414 + $0x38] sm:$0xff]
      %v1040 = vld [vmem:[%s414 + $0x40] sm:$0xff]
      %v1041 = vld [vmem:[%s414 + $0x48] sm:$0xff]
      %v1042 = vld [vmem:[%s414 + $0x50] sm:$0xff]
      %v1043 = vld [vmem:[%s414 + $0x58] sm:$0xff]
      %v1044 = vld [vmem:[%s414 + $0x60] sm:$0xff]
      %v1045 = vld [vmem:[%s414 + $0x68] sm:$0xff]
      %v1046 = vld [vmem:[%s414 + $0x70] sm:$0xff]
      %v1047 = vld [vmem:[%s414 + $0x78] sm:$0xff]
      %v1048 = vsub.f32 %v1032, %v937
      %v1049 = vsub.f32 %v1033, %v942
      %v1050 = vsub.f32 %v1034, %v947
      %v1051 = vsub.f32 %v1035, %v952
      %v1052 = vsub.f32 %v1036, %v957
      %v1053 = vsub.f32 %v1037, %v962
      %v1054 = vsub.f32 %v1038, %v967
      %v1055 = vsub.f32 %v1039, %v972
      %v1056 = vsub.f32 %v1040, %v977
      %v1057 = vsub.f32 %v1041, %v982
      %v1058 = vsub.f32 %v1042, %v987
      %v1059 = vsub.f32 %v1043, %v992
      %v1060 = vsub.f32 %v1044, %v997
      %v1061 = vsub.f32 %v1045, %v1002
      %v1062 = vsub.f32 %v1046, %v1007
      %v1063 = vsub.f32 %v1047, %v1012
      %v1064 = vld [vmem:[%s8] sm:$0x1]
      %v1066 = vlaneseq
      %v1067 = vshrl.u32 %v1066, 7
      %v1068 = vsub.s32 0, %v1067
      %v1069 = vrot.slane %v1064, %v1068
      %v1071 = vmul.f32 %v1048, %v1069
      %v1072 = vmul.f32 %v1049, %v1069
      %v1073 = vmul.f32 %v1050, %v1069
      %v1074 = vmul.f32 %v1051, %v1069
      %v1075 = vmul.f32 %v1052, %v1069
      %v1076 = vmul.f32 %v1053, %v1069
      %v1077 = vmul.f32 %v1054, %v1069
      %v1078 = vmul.f32 %v1055, %v1069
      %v1079 = vmul.f32 %v1056, %v1069
      %v1080 = vmul.f32 %v1057, %v1069
      %v1081 = vmul.f32 %v1058, %v1069
      %v1082 = vmul.f32 %v1059, %v1069
      %v1083 = vmul.f32 %v1060, %v1069
      %v1084 = vmul.f32 %v1061, %v1069
      %v1085 = vmul.f32 %v1062, %v1069
      %v1086 = vmul.f32 %v1063, %v1069
      %v1087 = vld [vmem:[#allocation2] sm:$0x1]
      %v1088 = vmul.f32 %v1071, %v1071
      %v1089 = vmul.f32 %v1072, %v1072
      %v1090 = vmul.f32 %v1073, %v1073
      %v1091 = vmul.f32 %v1074, %v1074
      %v1092 = vmul.f32 %v1075, %v1075
      %v1093 = vmul.f32 %v1076, %v1076
      %v1094 = vmul.f32 %v1077, %v1077
      %v1095 = vmul.f32 %v1078, %v1078
      %v1096 = vmul.f32 %v1079, %v1079
      %v1097 = vmul.f32 %v1080, %v1080
      %v1098 = vmul.f32 %v1081, %v1081
      %v1099 = vmul.f32 %v1082, %v1082
      %v1100 = vmul.f32 %v1083, %v1083
      %v1101 = vmul.f32 %v1084, %v1084
      %v1102 = vmul.f32 %v1085, %v1085
      %v1103 = vmul.f32 %v1086, %v1086
      %v1104 = vsel %vm1015, %v1088, 0.0
      %1105 = vadd.xlane.f32.xlu0 %v1104
      %v1106 = vpop.xlane.xlu0 %1105
      %v1107 = vsel %vm1015, %v1089, 0.0
      %1108 = vadd.xlane.f32.xlu0 %v1107
      %v1109 = vpop.xlane.xlu0 %1108
      %v1110 = vsel %vm1015, %v1090, 0.0
      %1111 = vadd.xlane.f32.xlu0 %v1110
      %v1112 = vpop.xlane.xlu0 %1111
      %v1113 = vsel %vm1015, %v1091, 0.0
      %1114 = vadd.xlane.f32.xlu0 %v1113
      %v1115 = vpop.xlane.xlu0 %1114
      %v1116 = vsel %vm1015, %v1092, 0.0
      %1117 = vadd.xlane.f32.xlu0 %v1116
      %v1118 = vpop.xlane.xlu0 %1117
      %v1119 = vsel %vm1015, %v1093, 0.0
      %1120 = vadd.xlane.f32.xlu0 %v1119
      %v1121 = vpop.xlane.xlu0 %1120
      %v1122 = vsel %vm1015, %v1094, 0.0
      %1123 = vadd.xlane.f32.xlu0 %v1122
      %v1124 = vpop.xlane.xlu0 %1123
      %v1125 = vsel %vm1015, %v1095, 0.0
      %1126 = vadd.xlane.f32.xlu0 %v1125
      %v1127 = vpop.xlane.xlu0 %1126
      %v1128 = vsel %vm1015, %v1096, 0.0
      %1129 = vadd.xlane.f32.xlu0 %v1128
      %v1130 = vpop.xlane.xlu0 %1129
      %v1131 = vsel %vm1015, %v1097, 0.0
      %1132 = vadd.xlane.f32.xlu0 %v1131
      %v1133 = vpop.xlane.xlu0 %1132
      %v1134 = vsel %vm1015, %v1098, 0.0
      %1135 = vadd.xlane.f32.xlu0 %v1134
      %v1136 = vpop.xlane.xlu0 %1135
      %v1137 = vsel %vm1015, %v1099, 0.0
      %1138 = vadd.xlane.f32.xlu0 %v1137
      %v1139 = vpop.xlane.xlu0 %1138
      %v1140 = vsel %vm1015, %v1100, 0.0
      %1141 = vadd.xlane.f32.xlu0 %v1140
      %v1142 = vpop.xlane.xlu0 %1141
      %v1143 = vsel %vm1015, %v1101, 0.0
      %1144 = vadd.xlane.f32.xlu0 %v1143
      %v1145 = vpop.xlane.xlu0 %1144
      %v1146 = vsel %vm1015, %v1102, 0.0
      %1147 = vadd.xlane.f32.xlu0 %v1146
      %v1148 = vpop.xlane.xlu0 %1147
      %v1149 = vsel %vm1015, %v1103, 0.0
      %1150 = vadd.xlane.f32.xlu0 %v1149
      %v1151 = vpop.xlane.xlu0 %1150
      %v1152 = vmul.f32 %v1106, 0.5
      %v1153 = vmul.f32 %v1109, 0.5
      %v1154 = vmul.f32 %v1112, 0.5
      %v1155 = vmul.f32 %v1115, 0.5
      %v1156 = vmul.f32 %v1118, 0.5
      %v1157 = vmul.f32 %v1121, 0.5
      %v1158 = vmul.f32 %v1124, 0.5
      %v1159 = vmul.f32 %v1127, 0.5
      %v1160 = vmul.f32 %v1130, 0.5
      %v1161 = vmul.f32 %v1133, 0.5
      %v1162 = vmul.f32 %v1136, 0.5
      %v1163 = vmul.f32 %v1139, 0.5
      %v1164 = vmul.f32 %v1142, 0.5
      %v1165 = vmul.f32 %v1145, 0.5
      %v1166 = vmul.f32 %v1148, 0.5
      %v1167 = vmul.f32 %v1151, 0.5
      %v1169 = vlaneseq
      %v1170 = vshrl.u32 %v1169, 7
      %v1171 = vsub.s32 0, %v1170
      %v1172 = vrot.slane %v1087, %v1171
      %v1174 = vsub.f32 %v1172, %v1152
      %v1175 = vsub.f32 %v1172, %v1153
      %v1176 = vsub.f32 %v1172, %v1154
      %v1177 = vsub.f32 %v1172, %v1155
      %v1178 = vsub.f32 %v1172, %v1156
      %v1179 = vsub.f32 %v1172, %v1157
      %v1180 = vsub.f32 %v1172, %v1158
      %v1181 = vsub.f32 %v1172, %v1159
      %v1182 = vsub.f32 %v1172, %v1160
      %v1183 = vsub.f32 %v1172, %v1161
      %v1184 = vsub.f32 %v1172, %v1162
      %v1185 = vsub.f32 %v1172, %v1163
      %v1186 = vsub.f32 %v1172, %v1164
      %v1187 = vsub.f32 %v1172, %v1165
      %v1188 = vsub.f32 %v1172, %v1166
      %v1189 = vsub.f32 %v1172, %v1167
      %vm1190 = vcmask 7168
      %1191 = vst.msk [vmem:[%s426] sm:$0xff] %vm1190, %v1174
      %1192 = vst.msk [vmem:[%s426 + $0x8] sm:$0xff] %vm1190, %v1175
      %1193 = vst.msk [vmem:[%s426 + $0x10] sm:$0xff] %vm1190, %v1176
      %1194 = vst.msk [vmem:[%s426 + $0x18] sm:$0xff] %vm1190, %v1177
      %1195 = vst.msk [vmem:[%s426 + $0x20] sm:$0xff] %vm1190, %v1178
      %1196 = vst.msk [vmem:[%s426 + $0x28] sm:$0xff] %vm1190, %v1179
      %1197 = vst.msk [vmem:[%s426 + $0x30] sm:$0xff] %vm1190, %v1180
      %1198 = vst.msk [vmem:[%s426 + $0x38] sm:$0xff] %vm1190, %v1181
      %1199 = vst.msk [vmem:[%s426 + $0x40] sm:$0xff] %vm1190, %v1182
      %1200 = vst.msk [vmem:[%s426 + $0x48] sm:$0xff] %vm1190, %v1183
      %1201 = vst.msk [vmem:[%s426 + $0x50] sm:$0xff] %vm1190, %v1184
      %1202 = vst.msk [vmem:[%s426 + $0x58] sm:$0xff] %vm1190, %v1185
      %1203 = vst.msk [vmem:[%s426 + $0x60] sm:$0xff] %vm1190, %v1186
      %1204 = vst.msk [vmem:[%s426 + $0x68] sm:$0xff] %vm1190, %v1187
      %1205 = vst.msk [vmem:[%s426 + $0x70] sm:$0xff] %vm1190, %v1188
      %1206 = vst.msk [vmem:[%s426 + $0x78] sm:$0xff] %vm1190, %v1189
      %s1207 = smul.u32 16, %s25
      %p1208 = scmp.lt.s32.totalorder %s1207, 31
      %s1209 = scalar_select %p1208, %s1207, 31
      %s1210 = smul.addr %s1209, 8
      %s1211 = scalar_lea.vmem %s10, %s1210
      %s1212 = smul.u32 16, %s25
      %p1213 = scmp.lt.s32.totalorder %s1212, 31
      %s1214 = scalar_select %p1213, %s1212, 31
      %s1215 = smul.addr %s1214, 8
      %s1216 = scalar_lea.vmem %s11, %s1215
      // Predicated region
      $region61: #{continuous_mlp_actor_forward.1} parent=59 // pred_check
        %p1217 = pneg %p263
      $region62: #{continuous_mlp_actor_forward.1} parent=59 // pred_check_branch
        %1219 = sbr.rel (%p1217) target = $region64
      $region63: #{continuous_mlp_actor_forward.1} parent=59 // pred_region
        %s1220 = smul.u32 16, %s25
      $region64: #{continuous_mlp_actor_forward.1} parent=59 // pred_fallthru
        _
      // Predicated region
      $region65: #{continuous_mlp_actor_forward.1} parent=59 // pred_check
        %p1221 = pneg %p289
      $region66: #{continuous_mlp_actor_forward.1} parent=59 // pred_check_branch
        %1223 = sbr.rel (%p1221) target = $region68
      $region67: #{continuous_mlp_actor_forward.1} parent=59 // pred_region
        %s1224 = smul.u32 16, %s25
      $region68: #{continuous_mlp_actor_forward.1} parent=59 // pred_fallthru
        _
    $region60: #{continuous_mlp_actor_forward.1} parent=5 // pred_fallthru
      _
    %p1225 = scmp.le.s32.totalorder 2, %s20
    // Predicated region
    $region69: #{continuous_mlp_actor_forward.1} parent=5 // pred_check
      %p1226 = pneg %p1225
    $region70: #{continuous_mlp_actor_forward.1} parent=5 // pred_check_branch
      %1228 = sbr.rel (%p1226) target = $region72
    $region71: #{continuous_mlp_actor_forward.1} parent=5 // pred_region
      %s1229 = ssub.s32 %s20, 2
      // Predicated region
      $region73: #{continuous_mlp_actor_forward.1} parent=71 // pred_check
        %p1230 = pneg %p269
      $region74: #{continuous_mlp_actor_forward.1} parent=71 // pred_check_branch
        %1232 = sbr.rel (%p1230) target = $region76
      $region75: #{continuous_mlp_actor_forward.1} parent=71 // pred_region
        %s1233 = smul.u32 16, %s26
        %p1234 = scmp.lt.s32.totalorder %s1233, 31
        %s1235 = scalar_select %p1234, %s1233, 31
        %s1236 = smul.addr %s1235, 8
        %s1237 = scalar_lea.vmem %s10, %s1236
      $region76: #{continuous_mlp_actor_forward.1} parent=71 // pred_fallthru
        _
      // Predicated region
      $region77: #{continuous_mlp_actor_forward.1} parent=71 // pred_check
        %p1238 = pneg %p295
      $region78: #{continuous_mlp_actor_forward.1} parent=71 // pred_check_branch
        %1240 = sbr.rel (%p1238) target = $region80
      $region79: #{continuous_mlp_actor_forward.1} parent=71 // pred_region
        %s1241 = smul.u32 16, %s26
        %p1242 = scmp.lt.s32.totalorder %s1241, 31
        %s1243 = scalar_select %p1242, %s1241, 31
        %s1244 = smul.addr %s1243, 8
        %s1245 = scalar_lea.vmem %s11, %s1244
      $region80: #{continuous_mlp_actor_forward.1} parent=71 // pred_fallthru
        _
    $region72: #{continuous_mlp_actor_forward.1} parent=5 // pred_fallthru
      _
  $region6: #{continuous_mlp_actor_forward.1} parent=0 // loop_footer
    %s24 = sadd.s32 1, %s20
  $region7: #{continuous_mlp_actor_forward.1} parent=0 // loop_footer_branch
    %19 = sbr.rel target = $region3
  $region8: #{continuous_mlp_actor_forward.1} parent=0 // loop_exit
    _

</llo_original>
